<compile_context>
chip_gen: v5e
topology: v5e:2x2
jax: 0.10.0
libtpu: 0.0.40
codegen_flags: <defaults>
</compile_context>

<pallas_src>
import functools

import jax
import jax.numpy as jnp
from jax import lax
from jax.experimental import pallas as pl
from jax.experimental.pallas import tpu as pltpu

_LANE = 128


# ----------------------------------------------------------------------------
# Stage 1: streamed, masked per-sensor partial sums (HBM-bandwidth bound).
# ----------------------------------------------------------------------------
def _partial_sum_kernel(x_ref, psum_ref, *, feature_tile, tiles_per_split,
                        num_features):
    s = pl.program_id(0)          # core split ("parallel")
    t = pl.program_id(1)          # feature tile within the split ("arbitrary")

    @pl.when(t == 0)
    def _init():
        psum_ref[...] = jnp.zeros_like(psum_ref)

    # Global start column of the *logical* tile.  Phantom tiles (odd tile counts) and
    # the ragged tail land past num_features and are fully masked below.
    tile_start = (s * tiles_per_split + t) * feature_tile

    lane = lax.broadcasted_iota(jnp.int32, (1, _LANE), 1)   # hoisted once per step
    n_chunks = feature_tile // _LANE

    def _accum_chunk(off):
        xc = x_ref[:, pl.ds(off, _LANE)].astype(jnp.float32)          # (N, 128)
        # Mask lanes whose global column >= num_features (Pallas does not zero
        # out-of-bounds block regions).
        valid = lane < (num_features - (tile_start + off))
        psum_ref[...] += jnp.where(valid, xc, 0.0)                    # pure VPU

    if n_chunks <= 8:
        for c in range(n_chunks):                 # static unroll, LLO-visible
            _accum_chunk(c * _LANE)
    else:
        @pl.loop(0, n_chunks)
        def _(c):
            _accum_chunk(pl.multiple_of(c * _LANE, _LANE))


# ----------------------------------------------------------------------------
# Stage 2: tiny combine + gumbel-noise + top-k epilogue kernel.
# ----------------------------------------------------------------------------
def _gumbel_topk_kernel(psum_ref, u_ref, inv_beta_ref, out_ref, cur_ref,
                        *, top_k, eps, num_sensors, num_features):
    n = num_sensors

    # Combine per-split partials (elementwise VPU adds) -> (N, 128).
    acc = jnp.sum(psum_ref[...], axis=0)

    # Lane-reduce + (N,*)->(1,N) relayout in ONE tiny MXU matmul:
    #   scores[0, j] = sum_l acc[j, l]
    ones_row = jnp.ones((1, _LANE), jnp.float32)
    scores = lax.dot_general(ones_row, acc, (((1,), (1,)), ((), ())),
                             preferred_element_type=jnp.float32)       # (1, N)
    scores = scores * jnp.float32(1.0 / num_features)                  # mean over true d

    # Gumbel noise from the provided uniform samples (EUP transcendental path).
    u = u_ref[...].astype(jnp.float32)                                 # (1, N)
    gumbel = -jnp.log(-jnp.log(u + eps) + eps)

    cur_ref[...] = (scores + gumbel) * inv_beta_ref[0]                 # (1, N)

    lane_idx = lax.broadcasted_iota(jnp.int32, (1, n), 1)
    neg_inf = jnp.float32(-jnp.inf)

    def _select_one(j):
        cur = cur_ref[...]
        m = jnp.max(cur)
        # smallest index attaining the max (matches lax.top_k / torch.topk ties)
        sel = jnp.min(jnp.where(cur == m, lane_idx, jnp.int32(n))).astype(jnp.int32)
        out_ref[j] = sel
        cur_ref[...] = jnp.where(lane_idx == sel, neg_inf, cur)

    if top_k <= 8:
        for j in range(top_k):                    # small & static -> fully unrolled
            _select_one(j)
    else:
        # TODO(synk): for top_k in the hundreds, fold (value, ~index) into one monotone
        # sort key to halve the cross-lane reductions per selection.
        @pl.loop(0, top_k)
        def _(j):
            _select_one(j)


# ----------------------------------------------------------------------------
# Wrapper.
# ----------------------------------------------------------------------------
def _vmem_capacity_bytes():
    try:
        info = pltpu.get_tpu_info()
        return int(getattr(info, "vmem_capacity_bytes", 64 << 20))
    except Exception:
        return 64 << 20            # assume the smallest (v7x) if query unavailable


def gumbel_topk_select(x, u, beta, *, top_k, eps=1e-6, feature_tile=None,
                       tile_budget_bytes=None):
    """x: (num_sensors, num_features) [f32 or bf16]; u: (num_sensors,) uniforms in [0,1);
    beta: scalar. Returns int32 indices of shape (top_k,), matching
    torch.topk((x.mean(1) + gumbel(u)) / beta, top_k).indices.
    """
    n, d = x.shape
    itemsize = jnp.dtype(x.dtype).itemsize

    vmem_cap = _vmem_capacity_bytes()
    if tile_budget_bytes is None:
        # ~24 MiB/buffer on 128-MiB parts (v5e/v6e), ~8 MiB/buffer on v7x (64 MiB).
        tile_budget_bytes = (24 << 20) if vmem_cap >= (100 << 20) else (8 << 20)

    # Largest lane-multiple tile whose double-buffered copy fits the budget, clamped to
    # the 128-rounded feature extent.  Explicit feature_tile is clamped the same way so
    # we never exceed physical VMEM.
    # TODO(synk): for very large num_sensors, add a sensor-block axis instead of letting
    # the tile scale linearly with n.
    max_td = max(_LANE, (tile_budget_bytes // max(1, n * itemsize)) // _LANE * _LANE)
    d_rounded = pl.cdiv(d, _LANE) * _LANE
    if feature_tile is None:
        td = min(d_rounded, max_td)
    else:
        td = min(max(_LANE, pl.cdiv(int(feature_tile), _LANE) * _LANE),
                 max_td, d_rounded)

    num_tiles = pl.cdiv(d, td)
    # Leading "parallel" axis: v7x's two TensorCores each reduce half of the feature
    # tiles; on single-core v5e/v6e the split just runs sequentially at no extra cost.
    num_splits = 2 if num_tiles >= 2 else 1
    tiles_per_split = pl.cdiv(num_tiles, num_splits)

    tile_bytes = n * td * itemsize
    vmem_limit = int(min(2 * tile_bytes + (8 << 20), int(0.85 * vmem_cap)))
    vmem_limit = max(vmem_limit, 4 << 20)

    # ---- stage 1: partial sums ----
    psum_kernel = functools.partial(
        _partial_sum_kernel, feature_tile=td,
        tiles_per_split=tiles_per_split, num_features=d)

    def x_index_map(s, t):
        # Clamp phantom tiles (odd tile counts) onto a valid block; their contribution
        # is zeroed by the in-kernel column mask.
        return (0, jnp.minimum(s * tiles_per_split + t, num_tiles - 1))

    partial_sums = pl.pallas_call(
        psum_kernel,
        out_shape=jax.ShapeDtypeStruct((num_splits, n, _LANE), jnp.float32),
        grid_spec=pltpu.PrefetchScalarGridSpec(
            num_scalar_prefetch=0,
            grid=(num_splits, tiles_per_split),
            in_specs=[pl.BlockSpec((n, td), x_index_map)],
            out_specs=pl.BlockSpec((None, n, _LANE), lambda s, t: (s, 0, 0)),
        ),
        compiler_params=pltpu.CompilerParams(
            dimension_semantics=("parallel", "arbitrary"),
            vmem_limit_bytes=vmem_limit,
        ),
    )(x)

    # ---- stage 2: combine + gumbel + top-k ----
    u_row = u.astype(jnp.float32).reshape(1, n)                       # lane-dense
    inv_beta = (jnp.float32(1.0) / jnp.asarray(beta, jnp.float32)).reshape(1)

    topk_kernel = functools.partial(
        _gumbel_topk_kernel, top_k=top_k, eps=eps, num_sensors=n, num_features=d)

    return pl.pallas_call(
        topk_kernel,
        out_shape=jax.ShapeDtypeStruct((top_k,), jnp.int32),
        grid_spec=pltpu.PrefetchScalarGridSpec(
            num_scalar_prefetch=0,
            grid=(1,),
            in_specs=[
                pl.BlockSpec((num_splits, n, _LANE), lambda i: (0, 0, 0)),
                pl.BlockSpec((1, n), lambda i: (0, 0)),
                pl.BlockSpec(memory_space=pltpu.SMEM),                # 1/beta, (1,)
            ],
            out_specs=pl.BlockSpec(memory_space=pltpu.SMEM),          # (top_k,) int32
            scratch_shapes=[pltpu.VMEM((1, n), jnp.float32)],         # working scores
        ),
        compiler_params=pltpu.CompilerParams(
            dimension_semantics=("arbitrary",),
        ),
    )(partial_sums, u_row, inv_beta)


def _reference(x, u, beta, top_k, eps=1e-6):
    scores = jnp.mean(x, axis=1)
    gumbel = -jnp.log(-jnp.log(u + eps) + eps)
    noisy = (scores + gumbel) / beta
    return lax.top_k(noisy, top_k)[1].astype(jnp.int32)


if __name__ == "__main__":
    num_sensors, num_features = 16, 1100   # 1100 = ragged vs 128 (exercises masking)
    beta = 0.5
    eps = 1e-6

    key = jax.random.PRNGKey(0)
    kx, ku = jax.random.split(key)
    X = jax.random.normal(kx, (num_sensors, num_features), dtype=jnp.float32)
    # torch.rand equivalent (uniform [0,1)); the Gumbel transform happens in-kernel.
    U = jax.random.uniform(ku, (num_sensors,), dtype=jnp.float32)

    # (a) small explicit tile: exercises the dual-split "parallel" axis, the clamped
    #     phantom tile (9 tiles -> 2x5 grid), the ragged-column mask, unrolled paths.
    out_a = jax.block_until_ready(
        gumbel_topk_select(X, U, beta, top_k=4, eps=eps, feature_tile=128))
    ref_a = jax.block_until_ready(_reference(X, U, beta, 4, eps))
    assert out_a.shape == (4,) and out_a.dtype == jnp.int32
    assert bool(jnp.all(out_a == ref_a)), (out_a, ref_a)

    # (b) default single deep tile: exercises the rolled chunk loop (9 chunks), the
    #     single-split path, and the rolled top-k selection loop (top_k=12).
    out_b = jax.block_until_ready(
        gumbel_topk_select(X, U, beta, top_k=12, eps=eps))
    ref_b = jax.block_until_ready(_reference(X, U, beta, 12, eps))
    assert out_b.shape == (12,) and out_b.dtype == jnp.int32
    assert bool(jnp.all(out_b == ref_b)), (out_b, ref_b)

    print("KERNEL_OK")
</pallas_src>

<mosaic_0001>
module attributes {stable_mosaic.version = 11 : i64} {
  func.func @_partial_sum_kernel(%arg0: i32, %arg1: i32, %arg2: memref<16x128xf32, #tpu.memory_space<vmem>>, %arg3: memref<1x16x128xf32, #tpu.memory_space<vmem>>) attributes {dimension_semantics = [#tpu.dimension_semantics<parallel>, #tpu.dimension_semantics<arbitrary>], iteration_bounds = array<i64: 2, 5>, scalar_prefetch = 0 : i64, scratch_operands = 0 : i64, tpu.core_type = #tpu.core_type<tc>, window_params = [{transform_indices = @transform_0, window_bounds = array<i64: 16, 128>}, {transform_indices = @transform_1, window_bounds = array<i64: 1, 16, 128>}]} {
    %c0_i32 = arith.constant 0 : i32
    %0 = arith.cmpi eq, %arg1, %c0_i32 : i32
    %1 = arith.extui %0 : i1 to i32
    %c0_i32_0 = arith.constant 0 : i32
    %2 = arith.cmpi ne, %1, %c0_i32_0 : i32
    scf.if %2 {
      %cst_9 = arith.constant 0.000000e+00 : f32
      %22 = vector.broadcast %cst_9 : f32 to vector<16x128xf32>
      %c0_10 = arith.constant 0 : index
      %c0_11 = arith.constant 0 : index
      %c0_12 = arith.constant 0 : index
      %23 = vector.load %arg3[%c0_10, %c0_11, %c0_12] : memref<1x16x128xf32, #tpu.memory_space<vmem>>, vector<1x16x128xf32>
      %24 = vector.shape_cast %23 : vector<1x16x128xf32> to vector<16x128xf32>
      %25 = vector.shape_cast %22 : vector<16x128xf32> to vector<1x16x128xf32>
      tpu.vector_store %arg3[%c0_10, %c0_11, %c0_12], %25 {strides = array<i32>} : memref<1x16x128xf32, #tpu.memory_space<vmem>>, vector<1x16x128xf32>,
    } else {
    }
    %c5_i32 = arith.constant 5 : i32
    %3 = arith.muli %arg0, %c5_i32 : i32
    %4 = arith.addi %3, %arg1 : i32
    %c128_i32 = arith.constant 128 : i32
    %5 = arith.muli %4, %c128_i32 : i32
    %6 = tpu.iota {dimensions = array<i32: 1>} : vector<1x128xi32>
    %c0 = arith.constant 0 : index
    %c0_1 = arith.constant 0 : index
    %7 = vector.load %arg2[%c0, %c0_1] : memref<16x128xf32, #tpu.memory_space<vmem>>, vector<16x128xf32>
    %c0_i32_2 = arith.constant 0 : i32
    %8 = arith.addi %5, %c0_i32_2 : i32
    %c1100_i32 = arith.constant 1100 : i32
    %9 = arith.subi %c1100_i32, %8 : i32
    %10 = vector.broadcast %9 : i32 to vector<1x128xi32>
    %11 = arith.cmpi slt, %6, %10 : vector<1x128xi32>
    %c0_3 = arith.constant 0 : index
    %c0_4 = arith.constant 0 : index
    %c0_5 = arith.constant 0 : index
    %12 = vector.load %arg3[%c0_3, %c0_4, %c0_5] : memref<1x16x128xf32, #tpu.memory_space<vmem>>, vector<1x16x128xf32>
    %13 = vector.shape_cast %12 : vector<1x16x128xf32> to vector<16x128xf32>
    %cst = arith.constant 0.000000e+00 : f32
    %14 = vector.shape_cast %11 : vector<1x128xi1> to vector<1x128xi1>
    %15 = vector.broadcast %14 : vector<1x128xi1> to vector<16x128xi1>
    %16 = vector.broadcast %cst : f32 to vector<16x128xf32>
    %17 = arith.select %15, %7, %16 : vector<16x128xi1>, vector<16x128xf32>
    %18 = arith.addf %13, %17 : vector<16x128xf32>
    %c0_6 = arith.constant 0 : index
    %c0_7 = arith.constant 0 : index
    %c0_8 = arith.constant 0 : index
    %19 = vector.load %arg3[%c0_6, %c0_7, %c0_8] : memref<1x16x128xf32, #tpu.memory_space<vmem>>, vector<1x16x128xf32>
    %20 = vector.shape_cast %19 : vector<1x16x128xf32> to vector<16x128xf32>
    %21 = vector.shape_cast %18 : vector<16x128xf32> to vector<1x16x128xf32>
    tpu.vector_store %arg3[%c0_6, %c0_7, %c0_8], %21 {strides = array<i32>} : memref<1x16x128xf32, #tpu.memory_space<vmem>>, vector<1x16x128xf32>,
    return
  }
  func.func @transform_0(%arg0: i32, %arg1: i32) -> (i32, i32) {
    %c5_i32 = arith.constant 5 : i32
    %0 = arith.muli %arg0, %c5_i32 : i32
    %1 = arith.addi %0, %arg1 : i32
    %c8_i32 = arith.constant 8 : i32
    %2 = arith.minsi %1, %c8_i32 : i32
    %c0_i32 = arith.constant 0 : i32
    %c0_i32_0 = arith.constant 0 : i32
    return %c0_i32, %2 : i32, i32
  }
  func.func @transform_1(%arg0: i32, %arg1: i32) -> (i32, i32, i32) {
    %c0_i32 = arith.constant 0 : i32
    %c0_i32_0 = arith.constant 0 : i32
    %c0_i32_1 = arith.constant 0 : i32
    return %arg0, %c0_i32, %c0_i32_0 : i32, i32, i32
  }
}

</mosaic_0001>

<llo_original>
// kernel: tpu_custom_call.1
$region0: #{tpu_custom_call.1}
  #allocation0 [shape = 'u32[]', space=smem, size = 0x4, offset = 0x4, fixed_abs, tag = 'smem constant byte address 0x4 - core index']
  #allocation1 [shape = 'u32[72,128]{1,0:T(1,128)}', space=vmem, size = 0x9000, scoped, tag = 'internal scratch']
  %s0 = inlined_call_operand.hbm [shape: f32[16,1100], index: 0, kind: input, shape index: {}]
  %s1 = inlined_call_operand.hbm [shape: f32[2,16,128], index: 1, kind: output, shape index: {}]
  %s2 = sld [smem:[#allocation0]]
  $region45: #{tpu_custom_call.1} parent=0
    _
  %s4 = ssub.s32 1, %s2
  %s5 = scalar_select 0, %s4, %s2
  $region1: #{tpu_custom_call.1} parent=0
    #allocation2 [shape = 'u8[16384]{0}', space=vmem, size = 0x4000, scoped, tag = 'input window, operand 0']
    #allocation3 [shape = 's32[2]{0}', space=sflag, size = 0x8, scoped, tag = 'scoped memory for tpu_custom_call.1']
    #allocation4 [shape = 's32[2]{0}', space=sflag, size = 0x8, scoped, tag = 'scoped memory for tpu_custom_call.1']
    #allocation5 [shape = 'u8[16384]{0}', space=vmem, size = 0x4000, scoped, tag = 'output window, operand 0']
    %6 = vsyncpa [#allocation3], 0
    %s7 = scalar_lea.sflag [#allocation3], 1
    %8 = vsyncpa %s7, 0
    %9 = vsyncpa [#allocation4], 0
    %s10 = scalar_lea.sflag [#allocation4], 1
    %11 = vsyncpa %s10, 0
    loop: start=0, step=1, limit=12
    $region2: #{tpu_custom_call.1} parent=1 // loop_pre_header
      _
    $region3: #{tpu_custom_call.1} parent=1 // loop_header
      %s13 = sphi 0, %s17
      %p14 = scmp.ge.s32.totalorder %s13, 12
      %s20 = sphi 0, %s32
      %s21 = sphi 0, %s28
      %s22 = sphi 0, %s20
      %s23 = sphi 0, %s21
      %s24 = sphi 0, %s22
      %s25 = sphi 0, %s23
      %s43 = sphi 0, %s45
      %s46 = sphi 0, %s43
      %s47 = sphi 0, %s46
      %s63 = sphi 0, %s47
      %s69 = sphi 0, %s71
      %s72 = sphi 0, %s69
      %s73 = sphi 0, %s72
      %s89 = sphi 0, %s73
    $region4: #{tpu_custom_call.1} parent=1 // loop_header_branch
      %16 = sbr.rel (%p14) target = $region8
    $region5: #{tpu_custom_call.1} parent=1 // loop_body
      %s18 = ssub.s32 %s13, 1
      %s19 = ssub.s32 %s13, 2
      %s26 = sadd.s32 1, %s21
      %p27 = scmp.ge.s32.totalorder %s26, 5
      %s28 = scalar_select %p27, 0, %s26
      %s29 = sadd.s32 1, %s20
      %s30 = scalar_select %p27, %s29, %s20
      %p31 = scmp.ge.s32.totalorder %s30, 2
      %s32 = scalar_select %p31, 0, %s30
      %s33 = smul.u32 %s20, 5
      %s34 = sadd.s32 %s33, %s21
      %p35 = scmp.lt.s32.totalorder %s34, 8
      %s36 = scalar_select %p35, %s34, 8
      %s37 = smul.u32 %s32, 5
      %s38 = sadd.s32 %s37, %s28
      %p39 = scmp.lt.s32.totalorder %s38, 8
      %s40 = scalar_select %p39, %s38, 8
      %s41 = ssub.s32 %s36, %s40
      %p42 = scmp.eq.s32.totalorder %s41, 0
      %s44 = sadd.s32 %s43, 1
      %s45 = scalar_select %p42, %s43, %s44
      %p48 = pneg %p42
      %p49 = scmp.eq.s32.totalorder %s13, 9
      %p50 = por %p48, %p49
      %p51 = scmp.ne.s32.totalorder %s43, %s46
      %p52 = scmp.eq.s32.totalorder %s13, 0
      %p53 = por %p51, %p52
      %p54 = scmp.ne.s32.totalorder %s43, %s46
      %p55 = scmp.eq.s32.totalorder %s18, 9
      %p56 = por %p54, %p55
      %p57 = scmp.ne.s32.totalorder %s46, %s47
      %p58 = scmp.eq.s32.totalorder %s18, 0
      %p59 = por %p57, %p58
      %p60 = scmp.ne.s32.totalorder %s46, %s47
      %p61 = scmp.eq.s32.totalorder %s19, 9
      %p62 = por %p60, %p61
      %p64 = scmp.ne.s32.totalorder %s47, %s63
      %p65 = scmp.eq.s32.totalorder %s19, 0
      %p66 = por %p64, %p65
      %s67 = ssub.s32 %s20, %s32
      %p68 = scmp.eq.s32.totalorder %s67, 0
      %s70 = sadd.s32 %s69, 1
      %s71 = scalar_select %p68, %s69, %s70
      %p74 = pneg %p68
      %p75 = scmp.eq.s32.totalorder %s13, 9
      %p76 = por %p74, %p75
      %p77 = scmp.ne.s32.totalorder %s69, %s72
      %p78 = scmp.eq.s32.totalorder %s13, 0
      %p79 = por %p77, %p78
      %p80 = scmp.ne.s32.totalorder %s69, %s72
      %p81 = scmp.eq.s32.totalorder %s18, 9
      %p82 = por %p80, %p81
      %p83 = scmp.ne.s32.totalorder %s72, %s73
      %p84 = scmp.eq.s32.totalorder %s18, 0
      %p85 = por %p83, %p84
      %p86 = scmp.ne.s32.totalorder %s72, %s73
      %p87 = scmp.eq.s32.totalorder %s19, 9
      %p88 = por %p86, %p87
      %p90 = scmp.ne.s32.totalorder %s73, %s89
      %p91 = scmp.eq.s32.totalorder %s19, 0
      %p92 = por %p90, %p91
      %p93 = scmp.le.s32.totalorder 1, %s13
      %p94 = scmp.lt.s32.totalorder %s13, 11
      %p95 = pnand %p93, %p94
      %p96 = pneg %p95
      // Predicated region
      $region9: #{tpu_custom_call.1} parent=5 // pred_check
        _
      $region10: #{tpu_custom_call.1} parent=5 // pred_check_branch
        %98 = sbr.rel (%p95) target = $region12
      $region11: #{tpu_custom_call.1} parent=5 // pred_region
        %s99 = ssub.s32 %s13, 1
      $region12: #{tpu_custom_call.1} parent=5 // pred_fallthru
        _
      %p100 = scmp.lt.s32.totalorder %s13, 10
      // Predicated region
      $region13: #{tpu_custom_call.1} parent=5 // pred_check
        %p101 = pneg %p100
      $region14: #{tpu_custom_call.1} parent=5 // pred_check_branch
        %103 = sbr.rel (%p101) target = $region16
      $region15: #{tpu_custom_call.1} parent=5 // pred_region
        // Predicated region
        $region17: #{tpu_custom_call.1} parent=15 // pred_check
          %p104 = pneg %p53
        $region18: #{tpu_custom_call.1} parent=15 // pred_check_branch
          %106 = sbr.rel (%p104) target = $region20
        $region19: #{tpu_custom_call.1} parent=15 // pred_region
          %s107 = sand.u32 %s43, 1
          %s108 = scalar_lea.sflag [#allocation3], %s107
          %s109 = sand.u32 %s43, 1
          %s110 = smul.addr %s109, 16
          %s111 = scalar_lea.vmem [#allocation2], %s110
          %s112 = smul.u32 %s20, 5
          %s113 = sadd.s32 %s112, %s21
          %p114 = scmp.lt.s32.totalorder %s113, 8
          %s115 = scalar_select %p114, %s113, 8
          %117 = vsyncadd %s108, 0
          %s118 = smul.addr %s115, 8
          %s119 = scalar_lea.hbm %s0, %s118
          %s120 = sshll.u32 %s119, 4
          %s121 = int_to_ptr.hbm [resolvable:$true] %s120
          %s122 = sshll.u32 %s111, 4
          %s123 = int_to_ptr.vmem [resolvable:$true] %s122
          %128 = dma.hbm_to_vmem [thread:$0]  %s121, 256, %s123, %s108, 1152, 128, 8
        $region20: #{tpu_custom_call.1} parent=15 // pred_fallthru
          _
      $region16: #{tpu_custom_call.1} parent=5 // pred_fallthru
        _
      %p129 = scmp.le.s32.totalorder 1, %s13
      %p130 = scmp.lt.s32.totalorder %s13, 11
      %p131 = pnand %p129, %p130
      %p132 = pneg %p131
      // Predicated region
      $region21: #{tpu_custom_call.1} parent=5 // pred_check
        _
      $region22: #{tpu_custom_call.1} parent=5 // pred_check_branch
        %134 = sbr.rel (%p131) target = $region24
      $region23: #{tpu_custom_call.1} parent=5 // pred_region
        %s135 = ssub.s32 %s13, 1
        %s136 = sand.u32 %s46, 1
        %s137 = scalar_lea.sflag [#allocation3], %s136
        %s138 = sand.u32 %s46, 1
        %s139 = smul.addr %s138, 16
        %s140 = scalar_lea.vmem [#allocation2], %s139
        // Predicated region
        $region25: #{tpu_custom_call.1} parent=23 // pred_check
          %p141 = pneg %p59
        $region26: #{tpu_custom_call.1} parent=23 // pred_check_branch
          %143 = sbr.rel (%p141) target = $region28
        $region27: #{tpu_custom_call.1} parent=23 // pred_region
          %145 = dma.done %s137, 256
        $region28: #{tpu_custom_call.1} parent=23 // pred_fallthru
          _
        %s146 = sand.u32 %s46, 1
        %s147 = scalar_lea.sflag [#allocation3], %s146
        %s148 = sand.u32 %s46, 1
        %s149 = smul.addr %s148, 16
        %s150 = scalar_lea.vmem [#allocation2], %s149
        %p151 = pneg %p59
        %p152 = pneg %p56
        %p153 = pneg %p85
        %p154 = pneg %p82
        %s155 = sand.u32 %s72, 1
        %s156 = scalar_lea.sflag [#allocation4], %s155
        %s157 = sand.u32 %s72, 1
        %s158 = smul.addr %s157, 16
        %s159 = scalar_lea.vmem [#allocation5], %s158
        %s160 = smul.u32 %s22, 5
        %s161 = sadd.s32 %s160, %s23
        %p162 = scmp.lt.s32.totalorder %s161, 8
        %s163 = scalar_select %p162, %s161, 8
        %p164 = scmp.eq.s32.totalorder %s23, 0
        // Predicated region
        $region29: #{tpu_custom_call.1} parent=23 // pred_check
          %p165 = pneg %p164
        $region30: #{tpu_custom_call.1} parent=23 // pred_check_branch
          %167 = sbr.rel (%p165) target = $region32
        $region31: #{tpu_custom_call.1} parent=23 // pred_region
          %168 = vst [vmem:[%s159] sm:$0xff] 0.0
          %169 = vst [vmem:[%s159 + $0x8] sm:$0xff] 0.0
        $region32: #{tpu_custom_call.1} parent=23 // pred_fallthru
          _
        %s170 = smul.u32 %s22, 5
        %s171 = sadd.s32 %s170, %s23
        %s172 = smul.u32 %s171, 128
        %v173 = vlaneseq
        %v174 = vand.u32 %v173, 127
        %v175 = vld [vmem:[%s140] sm:$0xff]
        %v176 = vld [vmem:[%s140 + $0x8] sm:$0xff]
        %s177 = ssub.s32 1100, %s172
        %v178 = vstv %s177
        %vm179 = vcmp.lt.s32.totalorder %v174, %v178
        %v180 = vld [vmem:[%s159] sm:$0xff]
        %v181 = vld [vmem:[%s159 + $0x8] sm:$0xff]
        %v182 = vsel %vm179, 1, 0
        %vm183 = vcmp.eq.s32.totalorder %v182, 1
        %v184 = vsel %vm183, %v175, 0.0
        %v185 = vsel %vm183, %v176, 0.0
        %v186 = vadd.f32 %v180, %v184
        %v187 = vadd.f32 %v181, %v185
        %188 = vst [vmem:[%s159] sm:$0xff] %v186
        %189 = vst [vmem:[%s159 + $0x8] sm:$0xff] %v187
        %s190 = sand.u32 %s72, 1
        %s191 = scalar_lea.sflag [#allocation4], %s190
        %s192 = sand.u32 %s72, 1
        %s193 = smul.addr %s192, 16
        %s194 = scalar_lea.vmem [#allocation5], %s193
        // Predicated region
        $region33: #{tpu_custom_call.1} parent=23 // pred_check
          %p195 = pneg %p82
        $region34: #{tpu_custom_call.1} parent=23 // pred_check_branch
          %197 = sbr.rel (%p195) target = $region36
        $region35: #{tpu_custom_call.1} parent=23 // pred_region
          %199 = vsyncadd %s191, 0
          %s200 = smul.addr %s22, 2
          %s201 = smul.addr %s200, 8
          %s202 = scalar_lea.hbm %s1, %s201
          %s203 = sshll.u32 %s194, 4
          %s204 = int_to_ptr.vmem [resolvable:$true] %s203
          %s205 = sshll.u32 %s202, 4
          %s206 = int_to_ptr.hbm [resolvable:$true] %s205
          %211 = dma.vmem_to_hbm [thread:$0]  %s204, 256, %s206, %s191, 128, 128, 8
        $region36: #{tpu_custom_call.1} parent=23 // pred_fallthru
          _
      $region24: #{tpu_custom_call.1} parent=5 // pred_fallthru
        _
      %p212 = scmp.le.s32.totalorder 2, %s13
      // Predicated region
      $region37: #{tpu_custom_call.1} parent=5 // pred_check
        %p213 = pneg %p212
      $region38: #{tpu_custom_call.1} parent=5 // pred_check_branch
        %215 = sbr.rel (%p213) target = $region40
      $region39: #{tpu_custom_call.1} parent=5 // pred_region
        %s216 = ssub.s32 %s13, 2
        // Predicated region
        $region41: #{tpu_custom_call.1} parent=39 // pred_check
          %p217 = pneg %p88
        $region42: #{tpu_custom_call.1} parent=39 // pred_check_branch
          %219 = sbr.rel (%p217) target = $region44
        $region43: #{tpu_custom_call.1} parent=39 // pred_region
          %s220 = sand.u32 %s73, 1
          %s221 = scalar_lea.sflag [#allocation4], %s220
          %s222 = sand.u32 %s73, 1
          %s223 = smul.addr %s222, 16
          %s224 = scalar_lea.vmem [#allocation5], %s223
          %226 = dma.done %s221, 256
        $region44: #{tpu_custom_call.1} parent=39 // pred_fallthru
          _
      $region40: #{tpu_custom_call.1} parent=5 // pred_fallthru
        _
    $region6: #{tpu_custom_call.1} parent=1 // loop_footer
      %s17 = sadd.s32 1, %s13
    $region7: #{tpu_custom_call.1} parent=1 // loop_footer_branch
      %12 = sbr.rel target = $region3
    $region8: #{tpu_custom_call.1} parent=1 // loop_exit
      _
    %227 = vsyncpa [#allocation3], 1
    %s228 = scalar_lea.sflag [#allocation3], 1
    %229 = vsyncpa %s228, 1
    %230 = vsyncpa [#allocation4], 1
    %s231 = scalar_lea.sflag [#allocation4], 1
    %232 = vsyncpa %s231, 1

</llo_original>
